<compile_context>
chip_gen: v5e
topology: v5e:2x2
jax: 0.10.0
libtpu: 0.0.40
codegen_flags: <defaults>
</compile_context>

<pallas_src>
import itertools
from functools import partial

import numpy as np

import jax
import jax.numpy as jnp
from jax import lax
from jax.experimental import pallas as pl
from jax.experimental.pallas import tpu as pltpu


def _pair(v):
    return tuple(v) if isinstance(v, (tuple, list)) else (v, v)


def _quadruple(v):
    return tuple(v) if isinstance(v, (tuple, list)) else (v, v, v, v)


def _round_up(a, m):
    return -(-a // m) * m


# --------------------------------------------------------------------------- chip info
def _device_kind():
    try:
        return jax.devices()[0].device_kind.lower()
    except Exception:
        return ""


def _vmem_params():
    """(per-step VMEM budget, vmem_limit_bytes) -- generation aware."""
    kind = _device_kind()
    if "v7" in kind:                                   # 64 MiB physical VMEM per TensorCore
        return 20 * 1024 * 1024, 40 * 1024 * 1024
    if any(g in kind for g in ("v4", "v5", "v6")):     # 128 MiB physical VMEM
        return 48 * 1024 * 1024, 96 * 1024 * 1024
    return 20 * 1024 * 1024, 40 * 1024 * 1024          # unknown: be conservative


def _is_v5e():
    kind = _device_kind()
    return ("v5e" in kind) or ("v5 lite" in kind) or ("v5lite" in kind)


# --------------------------------------------------------------------------- selection networks
def _dce(ces, med_idx):
    """Backward liveness pruning toward position med_idx.  Each kept compare-exchange
    carries flags saying whether its min half and/or max half is live."""
    needed = {med_idx}
    pruned = []
    for a, b in reversed(ces):
        need_min = a in needed
        need_max = b in needed
        if not (need_min or need_max):
            continue
        pruned.append((a, b, need_min, need_max))
        needed.add(a)
        needed.add(b)
    pruned.reverse()
    return pruned


def _pruned_network_ok(pruned, n, med_idx):
    """0/1-principle validation of the pruned selection network (build time only)."""
    for bits in itertools.product((0, 1), repeat=n):
        v = list(bits)
        for a, b, need_min, need_max in pruned:
            lo, hi = min(v[a], v[b]), max(v[a], v[b])
            if need_min:
                v[a] = lo
            if need_max:
                v[b] = hi
        if v[med_idx] != sorted(bits)[med_idx]:
            return False
    return True


def _median_select_ops(n, med_idx):
    # Odd-even transposition sort, pruned toward the lower-median index.
    ces = [(i, i + 1) for p in range(n) for i in range(p % 2, n - 1, 2)]
    pruned = _dce(ces, med_idx)
    if n <= 16:  # exhaustive 0/1 validation is cheap here
        assert _pruned_network_ok(pruned, n, med_idx), "median selection network invalid"
    return pruned


# --------------------------------------------------------------------------- kernels
def _med3(a, b, c):
    return jnp.maximum(jnp.minimum(a, b), jnp.minimum(jnp.maximum(a, b), c))


def _make_med3x3_kernel(sh, sw, strip_out, Wo_pad, cmp_dtype):
    """Exact 3x3 median via shared per-row pre-sort + separable vertical combine."""

    def kernel(x_ref, o_ref):
        # x_ref: (strip_in, Wneed, bb)  --  rows on the leading axis, channels on lanes.
        def col(dj):
            cs = pl.ds(dj, Wo_pad) if sw == 1 else pl.ds(dj, Wo_pad, stride=sw)
            return x_ref[:, cs, :].astype(cmp_dtype)

        c0, c1, c2 = col(0), col(1), col(2)
        # per-row (min, med, max) over the 3-wide window: 6 min/max per input row
        lo = jnp.minimum(c0, c1)
        hi = jnp.maximum(c0, c1)
        lo2 = jnp.minimum(hi, c2)
        rmax = jnp.maximum(hi, c2)
        rmin = jnp.minimum(lo, lo2)
        rmed = jnp.maximum(lo, lo2)

        def rows(t, d):  # leading-axis shift (cheap vreg selection), strided for sh > 1
            if sh == 1:
                return lax.slice_in_dim(t, d, d + strip_out, axis=0)
            return lax.slice(t, (d, 0, 0),
                             (d + sh * (strip_out - 1) + 1, t.shape[1], t.shape[2]),
                             (sh, 1, 1))

        mx = jnp.maximum(jnp.maximum(rows(rmin, 0), rows(rmin, 1)), rows(rmin, 2))
        mn = jnp.minimum(jnp.minimum(rows(rmax, 0), rows(rmax, 1)), rows(rmax, 2))
        md = _med3(rows(rmed, 0), rows(rmed, 1), rows(rmed, 2))
        out = _med3(mx, md, mn)            # exact median of the 9 window values
        o_ref[...] = out.astype(o_ref.dtype)

    return kernel


def _make_general_kernel(kh, kw, sh, sw, strip_out, Wo_pad, ops, med_idx, cmp_dtype):
    """General k*k lower median via a DCE-pruned odd-even selection network."""

    def kernel(x_ref, o_ref):
        cols = []
        for dj in range(kw):
            cs = pl.ds(dj, Wo_pad) if sw == 1 else pl.ds(dj, Wo_pad, stride=sw)
            cols.append(x_ref[:, cs, :].astype(cmp_dtype))
        vals = []
        for di in range(kh):
            for dj in range(kw):
                t = cols[dj]
                if sh == 1:
                    v = lax.slice_in_dim(t, di, di + strip_out, axis=0)
                else:
                    v = lax.slice(t, (di, 0, 0),
                                  (di + sh * (strip_out - 1) + 1, t.shape[1], t.shape[2]),
                                  (sh, 1, 1))
                vals.append(v)
        for a, b, need_min, need_max in ops:
            va, vb = vals[a], vals[b]
            if need_min:
                vals[a] = jnp.minimum(va, vb)
            if need_max:
                vals[b] = jnp.maximum(va, vb)
        o_ref[...] = vals[med_idx].astype(o_ref.dtype)

    return kernel


# --------------------------------------------------------------------------- wrapper
def median_pool_2d(x, kernel_size=3, stride=1, padding=0, same=False):
    """JAX/Pallas equivalent of MedianPool2d.forward.  x: (N, C, H, W)."""
    return _median_pool_2d_impl(x, _pair(kernel_size), _pair(stride),
                                _quadruple(padding), bool(same))


@partial(jax.jit, static_argnames=("k", "stride", "padding", "same"))
def _median_pool_2d_impl(x, k, stride, padding, same):
    kh, kw = k
    sh, sw = stride
    N, C, H, W = x.shape

    # --- padding amounts (identical to the PyTorch module) ---------------------------
    if same:
        ph = max(kh - sh, 0) if H % sh == 0 else max(kh - H % sh, 0)
        pw = max(kw - sw, 0) if W % sw == 0 else max(kw - W % sw, 0)
        p_l = pw // 2
        p_r = pw - p_l
        p_t = ph // 2
        p_b = ph - p_t
    else:
        p_l, p_r, p_t, p_b = padding

    Hp, Wp = H + p_t + p_b, W + p_l + p_r
    Ho = (Hp - kh) // sh + 1
    Wo = (Wp - kw) // sw + 1
    B = N * C

    # --- dtypes / chip-aware knobs ----------------------------------------------------
    budget, vmem_limit = _vmem_params()
    cmp_dtype = jnp.float32 if (x.dtype == jnp.bfloat16 and _is_v5e()) else x.dtype
    in_item = jnp.dtype(x.dtype).itemsize
    cmp_item = jnp.dtype(cmp_dtype).itemsize

    Wo_pad = _round_up(Wo, 8)              # sublane-aligned output -> unmasked stores
    Wneed = (Wo_pad - 1) * sw + kw         # input columns actually needed

    # --- tiling: channel (lane) block + output-row strips ------------------------------
    bb = B if B < 128 else 128
    # TODO(synk): when N*C < 128, fold non-overlapping W chunks into the lane dim to
    #             recover lane density instead of running with masked lanes.
    if kh == 3 and kw == 3:
        tmp_in, tmp_out = 3, 8
    else:
        tmp_in, tmp_out = kw, kh * kw + 2

    def step_bytes(so, bb_):
        si = (so - 1) * sh + kh
        per_chan = (2 * si * Wneed * in_item            # double-buffered input strip
                    + 2 * so * Wo_pad * in_item         # double-buffered output strip
                    + (tmp_in * si + tmp_out * so) * Wo_pad * cmp_item)   # live values
        return per_chan * bb_

    strip_out = Ho if Ho <= 8 else _round_up(Ho, 8)
    while strip_out > 8 and step_bytes(strip_out, bb) > budget:
        strip_out -= 8
    while step_bytes(strip_out, bb) > budget and bb > 8:
        bb = max(8, bb // 2)
    # TODO(synk): add W-strip tiling for planes so wide that (8 rows x 8 channels) still
    #             exceeds the VMEM budget.
    nb = -(-B // bb)
    Bp = nb * bb
    nstrips = -(-Ho // strip_out)
    if nb * nstrips < 2 and Ho > 8:        # >= 2 grid steps: pipelining + megacore sharding
        strip_out = _round_up(-(-Ho // 2), 8)
        nstrips = -(-Ho // strip_out)

    strip_in = (strip_out - 1) * sh + kh
    strip_stride = strip_out * sh
    Ho_pad = nstrips * strip_out
    Hneed = (Ho_pad - 1) * sh + kh

    # --- host-side prep: replicate pad, channel pad, overlapped halo strips -----------
    xb = x.reshape(B, H, W)
    xb = jnp.pad(xb,
                 ((0, 0),
                  (p_t, p_b + max(0, Hneed - Hp)),
                  (p_l, p_r + max(0, Wneed - Wp))),
                 mode="edge")
    xb = xb[:, :Hneed, :Wneed]
    if Bp != B:
        xb = jnp.pad(xb, ((0, Bp - B), (0, 0), (0, 0)))

    # (Bp, Hneed, Wneed) -> (nb, nstrips, strip_in, Wneed, bb): blocked channels on lanes,
    # overlapping row strips gathered host-side so every kernel DMA is contiguous.
    row_idx = np.arange(nstrips)[:, None] * strip_stride + np.arange(strip_in)[None, :]
    xg = xb.reshape(nb, bb, Hneed, Wneed)
    xg = jnp.take(xg, jnp.asarray(row_idx, dtype=jnp.int32), axis=2)
    xg = jnp.transpose(xg, (0, 2, 3, 4, 1))

    # --- build kernel ------------------------------------------------------------------
    if kh == 3 and kw == 3:
        kernel = _make_med3x3_kernel(sh, sw, strip_out, Wo_pad, cmp_dtype)
        ops_per_out = 6.0 * strip_in / strip_out + 12.0
    else:
        n = kh * kw
        med_idx = (n - 1) // 2             # lower median, matches torch.median
        ops = _median_select_ops(n, med_idx)
        kernel = _make_general_kernel(kh, kw, sh, sw, strip_out, Wo_pad, ops, med_idx,
                                      cmp_dtype)
        ops_per_out = sum(int(m) + int(mx) for _, _, m, mx in ops)

    cost = pl.CostEstimate(
        flops=int(ops_per_out * Ho_pad * Wo_pad * Bp),
        transcendentals=0,
        bytes_accessed=int((nstrips * strip_in * Wneed + Ho_pad * Wo_pad) * Bp * in_item),
    )

    out_t = pl.pallas_call(
        kernel,
        out_shape=jax.ShapeDtypeStruct((nb, nstrips, strip_out, Wo_pad, bb), x.dtype),
        grid_spec=pltpu.PrefetchScalarGridSpec(
            num_scalar_prefetch=0,
            grid=(nb, nstrips),
            in_specs=[pl.BlockSpec((None, None, strip_in, Wneed, bb),
                                   lambda cb, s: (cb, s, 0, 0, 0))],
            out_specs=pl.BlockSpec((None, None, strip_out, Wo_pad, bb),
                                   lambda cb, s: (cb, s, 0, 0, 0)),
        ),
        compiler_params=pltpu.CompilerParams(
            dimension_semantics=("parallel", "parallel"),
            vmem_limit_bytes=vmem_limit,
        ),
        cost_estimate=cost,
    )(xg)

    # --- back to NCHW -------------------------------------------------------------------
    # TODO(synk): callers that can consume channels-last directly can skip this relayout.
    out = jnp.transpose(out_t, (0, 4, 1, 2, 3)).reshape(Bp, Ho_pad, Wo_pad)
    out = out[:B, :Ho, :Wo].reshape(N, C, Ho, Wo)
    return out


# --------------------------------------------------------------------------- reference
def _reference(x, kernel_size=3, stride=1, padding=0, same=False):
    kh, kw = _pair(kernel_size)
    sh, sw = _pair(stride)
    N, C, H, W = x.shape
    if same:
        ph = max(kh - sh, 0) if H % sh == 0 else max(kh - H % sh, 0)
        pw = max(kw - sw, 0) if W % sw == 0 else max(kw - W % sw, 0)
        p_l = pw // 2
        p_r = pw - p_l
        p_t = ph // 2
        p_b = ph - p_t
    else:
        p_l, p_r, p_t, p_b = _quadruple(padding)
    xp = jnp.pad(x, ((0, 0), (0, 0), (p_t, p_b), (p_l, p_r)), mode="edge")
    Hp, Wp = xp.shape[2], xp.shape[3]
    Ho = (Hp - kh) // sh + 1
    Wo = (Wp - kw) // sw + 1
    wins = []
    for di in range(kh):
        for dj in range(kw):
            wins.append(xp[:, :, di: di + sh * (Ho - 1) + 1: sh,
                           dj: dj + sw * (Wo - 1) + 1: sw])
    stacked = jnp.stack(wins, axis=-1)
    srt = jnp.sort(stacked, axis=-1)
    n = kh * kw
    return srt[..., (n - 1) // 2]


if __name__ == "__main__":
    key = jax.random.PRNGKey(0)
    x = jax.random.normal(key, (2, 4, 16, 16), dtype=jnp.float32)

    # 3x3, stride 1, same=True -> output shape == input shape.
    out = jax.block_until_ready(median_pool_2d(x, kernel_size=3, stride=1, padding=0, same=True))
    ref = _reference(x, 3, 1, 0, True)
    assert out.shape == ref.shape == (2, 4, 16, 16), out.shape
    assert jnp.allclose(out, ref), "mismatch vs reference (3x3, same=True)"

    # default no-padding path: 16 -> 14.
    out2 = jax.block_until_ready(median_pool_2d(x, kernel_size=3, stride=1, padding=0))
    ref2 = _reference(x, 3, 1, 0, False)
    assert out2.shape == (2, 4, 14, 14), out2.shape
    assert jnp.allclose(out2, ref2), "mismatch vs reference (3x3, no pad)"

    # general k*k fallback path (5x5, DCE'd selection network).
    x3 = jax.random.normal(jax.random.PRNGKey(1), (1, 2, 12, 12), dtype=jnp.float32)
    out3 = jax.block_until_ready(median_pool_2d(x3, kernel_size=5, stride=1, padding=0, same=True))
    ref3 = _reference(x3, 5, 1, 0, True)
    assert out3.shape == ref3.shape == (1, 2, 12, 12), out3.shape
    assert jnp.allclose(out3, ref3), "mismatch vs reference (5x5, same=True)"

    # multi-channel-block path (B = 160 > 128 lanes -> 2 channel blocks, lane padding).
    x4 = jax.random.normal(jax.random.PRNGKey(2), (2, 80, 16, 16), dtype=jnp.float32)
    out4 = jax.block_until_ready(median_pool_2d(x4, kernel_size=3, stride=1, padding=0, same=True))
    ref4 = _reference(x4, 3, 1, 0, True)
    assert out4.shape == ref4.shape == (2, 80, 16, 16), out4.shape
    assert jnp.allclose(out4, ref4), "mismatch vs reference (3x3, B=160)"

    print("KERNEL_OK")
</pallas_src>

<mosaic_0001>
module attributes {stable_mosaic.version = 11 : i64} {
  func.func @kernel(%arg0: i32, %arg1: i32, %arg2: memref<1x1x10x18x8xf32, #tpu.memory_space<vmem>>, %arg3: memref<1x1x8x16x8xf32, #tpu.memory_space<vmem>>) attributes {dimension_semantics = [#tpu.dimension_semantics<parallel>, #tpu.dimension_semantics<parallel>], iteration_bounds = array<i64: 1, 2>, scalar_prefetch = 0 : i64, scratch_operands = 0 : i64, tpu.core_type = #tpu.core_type<tc>, window_params = [{transform_indices = @transform_0, window_bounds = array<i64: 1, 1, 10, 18, 8>}, {transform_indices = @transform_1, window_bounds = array<i64: 1, 1, 8, 16, 8>}]} {
    %c0 = arith.constant 0 : index
    %c0_0 = arith.constant 0 : index
    %c0_1 = arith.constant 0 : index
    %c0_2 = arith.constant 0 : index
    %c0_3 = arith.constant 0 : index
    %0 = vector.load %arg2[%c0, %c0_0, %c0_1, %c0_2, %c0_3] : memref<1x1x10x18x8xf32, #tpu.memory_space<vmem>>, vector<1x1x10x16x8xf32>
    %1 = vector.shape_cast %0 : vector<1x1x10x16x8xf32> to vector<10x16x8xf32>
    %c0_4 = arith.constant 0 : index
    %c0_5 = arith.constant 0 : index
    %c0_6 = arith.constant 0 : index
    %c1 = arith.constant 1 : index
    %c0_7 = arith.constant 0 : index
    %2 = vector.load %arg2[%c0_4, %c0_5, %c0_6, %c1, %c0_7] : memref<1x1x10x18x8xf32, #tpu.memory_space<vmem>>, vector<1x1x10x16x8xf32>
    %3 = vector.shape_cast %2 : vector<1x1x10x16x8xf32> to vector<10x16x8xf32>
    %c0_8 = arith.constant 0 : index
    %c0_9 = arith.constant 0 : index
    %c0_10 = arith.constant 0 : index
    %c2 = arith.constant 2 : index
    %c0_11 = arith.constant 0 : index
    %4 = vector.load %arg2[%c0_8, %c0_9, %c0_10, %c2, %c0_11] : memref<1x1x10x18x8xf32, #tpu.memory_space<vmem>>, vector<1x1x10x16x8xf32>
    %5 = vector.shape_cast %4 : vector<1x1x10x16x8xf32> to vector<10x16x8xf32>
    %6 = arith.minimumf %1, %3 : vector<10x16x8xf32>
    %7 = arith.maximumf %1, %3 : vector<10x16x8xf32>
    %8 = arith.minimumf %7, %5 : vector<10x16x8xf32>
    %9 = arith.maximumf %7, %5 : vector<10x16x8xf32>
    %10 = arith.minimumf %6, %8 : vector<10x16x8xf32>
    %11 = arith.maximumf %6, %8 : vector<10x16x8xf32>
    %12 = vector.extract_strided_slice %10 {offsets = [0, 0, 0], sizes = [8, 16, 8], strides = [1, 1, 1]} : vector<10x16x8xf32> to vector<8x16x8xf32>
    %13 = vector.extract_strided_slice %10 {offsets = [1, 0, 0], sizes = [8, 16, 8], strides = [1, 1, 1]} : vector<10x16x8xf32> to vector<8x16x8xf32>
    %14 = arith.maximumf %12, %13 : vector<8x16x8xf32>
    %15 = vector.extract_strided_slice %10 {offsets = [2, 0, 0], sizes = [8, 16, 8], strides = [1, 1, 1]} : vector<10x16x8xf32> to vector<8x16x8xf32>
    %16 = arith.maximumf %14, %15 : vector<8x16x8xf32>
    %17 = vector.extract_strided_slice %9 {offsets = [0, 0, 0], sizes = [8, 16, 8], strides = [1, 1, 1]} : vector<10x16x8xf32> to vector<8x16x8xf32>
    %18 = vector.extract_strided_slice %9 {offsets = [1, 0, 0], sizes = [8, 16, 8], strides = [1, 1, 1]} : vector<10x16x8xf32> to vector<8x16x8xf32>
    %19 = arith.minimumf %17, %18 : vector<8x16x8xf32>
    %20 = vector.extract_strided_slice %9 {offsets = [2, 0, 0], sizes = [8, 16, 8], strides = [1, 1, 1]} : vector<10x16x8xf32> to vector<8x16x8xf32>
    %21 = arith.minimumf %19, %20 : vector<8x16x8xf32>
    %22 = vector.extract_strided_slice %11 {offsets = [0, 0, 0], sizes = [8, 16, 8], strides = [1, 1, 1]} : vector<10x16x8xf32> to vector<8x16x8xf32>
    %23 = vector.extract_strided_slice %11 {offsets = [1, 0, 0], sizes = [8, 16, 8], strides = [1, 1, 1]} : vector<10x16x8xf32> to vector<8x16x8xf32>
    %24 = vector.extract_strided_slice %11 {offsets = [2, 0, 0], sizes = [8, 16, 8], strides = [1, 1, 1]} : vector<10x16x8xf32> to vector<8x16x8xf32>
    %25 = arith.minimumf %22, %23 : vector<8x16x8xf32>
    %26 = arith.maximumf %22, %23 : vector<8x16x8xf32>
    %27 = arith.minimumf %26, %24 : vector<8x16x8xf32>
    %28 = arith.maximumf %25, %27 : vector<8x16x8xf32>
    %29 = arith.minimumf %16, %28 : vector<8x16x8xf32>
    %30 = arith.maximumf %16, %28 : vector<8x16x8xf32>
    %31 = arith.minimumf %30, %21 : vector<8x16x8xf32>
    %32 = arith.maximumf %29, %31 : vector<8x16x8xf32>
    %c0_12 = arith.constant 0 : index
    %c0_13 = arith.constant 0 : index
    %c0_14 = arith.constant 0 : index
    %c0_15 = arith.constant 0 : index
    %c0_16 = arith.constant 0 : index
    %33 = vector.load %arg3[%c0_12, %c0_13, %c0_14, %c0_15, %c0_16] : memref<1x1x8x16x8xf32, #tpu.memory_space<vmem>>, vector<1x1x8x16x8xf32>
    %34 = vector.shape_cast %33 : vector<1x1x8x16x8xf32> to vector<8x16x8xf32>
    %35 = vector.shape_cast %32 : vector<8x16x8xf32> to vector<1x1x8x16x8xf32>
    tpu.vector_store %arg3[%c0_12, %c0_13, %c0_14, %c0_15, %c0_16], %35 {strides = array<i32>} : memref<1x1x8x16x8xf32, #tpu.memory_space<vmem>>, vector<1x1x8x16x8xf32>,
    return
  }
  func.func @transform_0(%arg0: i32, %arg1: i32) -> (i32, i32, i32, i32, i32) {
    %c0_i32 = arith.constant 0 : i32
    %c0_i32_0 = arith.constant 0 : i32
    %c0_i32_1 = arith.constant 0 : i32
    %c0_i32_2 = arith.constant 0 : i32
    return %arg0, %arg1, %c0_i32, %c0_i32_0, %c0_i32_1 : i32, i32, i32, i32, i32
  }
  func.func @transform_1(%arg0: i32, %arg1: i32) -> (i32, i32, i32, i32, i32) {
    %c0_i32 = arith.constant 0 : i32
    %c0_i32_0 = arith.constant 0 : i32
    %c0_i32_1 = arith.constant 0 : i32
    %c0_i32_2 = arith.constant 0 : i32
    return %arg0, %arg1, %c0_i32, %c0_i32_0, %c0_i32_1 : i32, i32, i32, i32, i32
  }
}

</mosaic_0001>

<llo_original>
// kernel: _median_pool_2d_impl.1
$region0: #{_median_pool_2d_impl.1}
  #allocation0 [shape = 'u32[]', space=smem, size = 0x4, offset = 0x4, fixed_abs, tag = 'smem constant byte address 0x4 - core index']
  #allocation1 [shape = 'u32[72,128]{1,0:T(1,128)}', space=vmem, size = 0x9000, scoped, tag = 'internal scratch']
  %s0 = inlined_call_operand.vmem [shape: f32[1,2,10,18,8], index: 0, kind: input, shape index: {}]
  %s1 = inlined_call_operand.vmem [shape: f32[1,2,8,16,8], index: 1, kind: output, shape index: {}]
  %s2 = sld [smem:[#allocation0]]
  $region37: #{_median_pool_2d_impl.1} parent=0
    _
  %s4 = ssub.s32 1, %s2
  %s5 = scalar_select 0, %s4, %s2
  loop: start=0, step=1, limit=4
  $region2: #{_median_pool_2d_impl.1} parent=0 // loop_pre_header
    _
  $region3: #{_median_pool_2d_impl.1} parent=0 // loop_header
    %s7 = sphi 0, %s11
    %p8 = scmp.ge.s32.totalorder %s7, 4
    %s14 = sphi 0, %s26
    %s15 = sphi 0, %s22
    %s16 = sphi 0, %s14
    %s17 = sphi 0, %s15
    %s18 = sphi 0, %s16
    %s19 = sphi 0, %s17
    %s31 = sphi 0, %s33
    %s34 = sphi 0, %s31
    %s35 = sphi 0, %s34
    %s51 = sphi 0, %s35
    %s59 = sphi 0, %s61
    %s62 = sphi 0, %s59
    %s63 = sphi 0, %s62
    %s79 = sphi 0, %s63
  $region4: #{_median_pool_2d_impl.1} parent=0 // loop_header_branch
    %10 = sbr.rel (%p8) target = $region8
  $region5: #{_median_pool_2d_impl.1} parent=0 // loop_body
    %s12 = ssub.s32 %s7, 1
    %s13 = ssub.s32 %s7, 2
    %s20 = sadd.s32 1, %s15
    %p21 = scmp.ge.s32.totalorder %s20, 2
    %s22 = scalar_select %p21, 0, %s20
    %s23 = sadd.s32 1, %s14
    %s24 = scalar_select %p21, %s23, %s14
    %p25 = scmp.ge.s32.totalorder %s24, 1
    %s26 = scalar_select %p25, 0, %s24
    %s27 = ssub.s32 %s14, %s26
    %s28 = ssub.s32 %s15, %s22
    %s29 = sor.u32 %s27, %s28
    %p30 = scmp.eq.s32.totalorder %s29, 0
    %s32 = sadd.s32 %s31, 1
    %s33 = scalar_select %p30, %s31, %s32
    %p36 = pneg %p30
    %p37 = scmp.eq.s32.totalorder %s7, 1
    %p38 = por %p36, %p37
    %p39 = scmp.ne.s32.totalorder %s31, %s34
    %p40 = scmp.eq.s32.totalorder %s7, 0
    %p41 = por %p39, %p40
    %p42 = scmp.ne.s32.totalorder %s31, %s34
    %p43 = scmp.eq.s32.totalorder %s12, 1
    %p44 = por %p42, %p43
    %p45 = scmp.ne.s32.totalorder %s34, %s35
    %p46 = scmp.eq.s32.totalorder %s12, 0
    %p47 = por %p45, %p46
    %p48 = scmp.ne.s32.totalorder %s34, %s35
    %p49 = scmp.eq.s32.totalorder %s13, 1
    %p50 = por %p48, %p49
    %p52 = scmp.ne.s32.totalorder %s35, %s51
    %p53 = scmp.eq.s32.totalorder %s13, 0
    %p54 = por %p52, %p53
    %s55 = ssub.s32 %s14, %s26
    %s56 = ssub.s32 %s15, %s22
    %s57 = sor.u32 %s55, %s56
    %p58 = scmp.eq.s32.totalorder %s57, 0
    %s60 = sadd.s32 %s59, 1
    %s61 = scalar_select %p58, %s59, %s60
    %p64 = pneg %p58
    %p65 = scmp.eq.s32.totalorder %s7, 1
    %p66 = por %p64, %p65
    %p67 = scmp.ne.s32.totalorder %s59, %s62
    %p68 = scmp.eq.s32.totalorder %s7, 0
    %p69 = por %p67, %p68
    %p70 = scmp.ne.s32.totalorder %s59, %s62
    %p71 = scmp.eq.s32.totalorder %s12, 1
    %p72 = por %p70, %p71
    %p73 = scmp.ne.s32.totalorder %s62, %s63
    %p74 = scmp.eq.s32.totalorder %s12, 0
    %p75 = por %p73, %p74
    %p76 = scmp.ne.s32.totalorder %s62, %s63
    %p77 = scmp.eq.s32.totalorder %s13, 1
    %p78 = por %p76, %p77
    %p80 = scmp.ne.s32.totalorder %s63, %s79
    %p81 = scmp.eq.s32.totalorder %s13, 0
    %p82 = por %p80, %p81
    %p83 = scmp.le.s32.totalorder 1, %s7
    %p84 = scmp.lt.s32.totalorder %s7, 3
    %p85 = pnand %p83, %p84
    %p86 = pneg %p85
    // Predicated region
    $region9: #{_median_pool_2d_impl.1} parent=5 // pred_check
      _
    $region10: #{_median_pool_2d_impl.1} parent=5 // pred_check_branch
      %88 = sbr.rel (%p85) target = $region12
    $region11: #{_median_pool_2d_impl.1} parent=5 // pred_region
      %s89 = ssub.s32 %s7, 1
    $region12: #{_median_pool_2d_impl.1} parent=5 // pred_fallthru
      _
    %p90 = scmp.lt.s32.totalorder %s7, 2
    // Predicated region
    $region13: #{_median_pool_2d_impl.1} parent=5 // pred_check
      %p91 = pneg %p90
    $region14: #{_median_pool_2d_impl.1} parent=5 // pred_check_branch
      %93 = sbr.rel (%p91) target = $region16
    $region15: #{_median_pool_2d_impl.1} parent=5 // pred_region
      // Predicated region
      $region17: #{_median_pool_2d_impl.1} parent=15 // pred_check
        %p94 = pneg %p41
      $region18: #{_median_pool_2d_impl.1} parent=15 // pred_check_branch
        %96 = sbr.rel (%p94) target = $region20
      $region19: #{_median_pool_2d_impl.1} parent=15 // pred_region
        %p97 = scmp.lt.s32.totalorder %s14, 0
        %s98 = scalar_select %p97, %s14, 0
        %p99 = scmp.lt.s32.totalorder %s15, 1
        %s100 = scalar_select %p99, %s15, 1
        %s101 = smul.addr %s100, 30
        %s102 = smul.addr %s98, 60
        %s103 = sadd.s32 %s101, %s102
        %s104 = smul.addr %s103, 8
        %s105 = scalar_lea.vmem %s0, %s104
      $region20: #{_median_pool_2d_impl.1} parent=15 // pred_fallthru
        _
    $region16: #{_median_pool_2d_impl.1} parent=5 // pred_fallthru
      _
    %p106 = scmp.le.s32.totalorder 1, %s7
    %p107 = scmp.lt.s32.totalorder %s7, 3
    %p108 = pnand %p106, %p107
    %p109 = pneg %p108
    // Predicated region
    $region21: #{_median_pool_2d_impl.1} parent=5 // pred_check
      _
    $region22: #{_median_pool_2d_impl.1} parent=5 // pred_check_branch
      %111 = sbr.rel (%p108) target = $region24
    $region23: #{_median_pool_2d_impl.1} parent=5 // pred_region
      %s112 = ssub.s32 %s7, 1
      %p113 = scmp.lt.s32.totalorder %s16, 0
      %s114 = scalar_select %p113, %s16, 0
      %p115 = scmp.lt.s32.totalorder %s17, 1
      %s116 = scalar_select %p115, %s17, 1
      %s117 = smul.addr %s116, 30
      %s118 = smul.addr %s114, 60
      %s119 = sadd.s32 %s117, %s118
      %s120 = smul.addr %s119, 8
      %s121 = scalar_lea.vmem %s0, %s120
      %p122 = pneg %p47
      %p123 = pneg %p44
      %p124 = pneg %p75
      %p125 = pneg %p72
      %p126 = scmp.lt.s32.totalorder %s16, 0
      %s127 = scalar_select %p126, %s16, 0
      %p128 = scmp.lt.s32.totalorder %s17, 1
      %s129 = scalar_select %p128, %s17, 1
      %s130 = smul.addr %s129, 16
      %s131 = smul.addr %s127, 32
      %s132 = sadd.s32 %s130, %s131
      %s133 = smul.addr %s132, 8
      %s134 = scalar_lea.vmem %s1, %s133
      %p135 = scmp.lt.s32.totalorder %s16, 0
      %s136 = scalar_select %p135, %s16, 0
      %p137 = scmp.lt.s32.totalorder %s17, 1
      %s138 = scalar_select %p137, %s17, 1
      %s139 = smul.addr %s138, 30
      %s140 = smul.addr %s136, 60
      %s141 = sadd.s32 %s139, %s140
      %s142 = smul.addr %s141, 8
      %s143 = scalar_lea.vmem %s0, %s142
      %p144 = scmp.lt.s32.totalorder %s16, 0
      %s145 = scalar_select %p144, %s16, 0
      %p146 = scmp.lt.s32.totalorder %s17, 1
      %s147 = scalar_select %p146, %s17, 1
      %s148 = smul.addr %s147, 16
      %s149 = smul.addr %s145, 32
      %s150 = sadd.s32 %s148, %s149
      %s151 = smul.addr %s150, 8
      %s152 = scalar_lea.vmem %s1, %s151
      %v153 = vld [vmem:[%s143] sm:$0xff]
      %v154 = vld [vmem:[%s143 + $0x8] sm:$0xff]
      %v155 = vld [vmem:[%s143 + $0x18] sm:$0xff]
      %v156 = vld [vmem:[%s143 + $0x20] sm:$0xff]
      %v157 = vld [vmem:[%s143 + $0x30] sm:$0xff]
      %v158 = vld [vmem:[%s143 + $0x38] sm:$0xff]
      %v159 = vld [vmem:[%s143 + $0x48] sm:$0xff]
      %v160 = vld [vmem:[%s143 + $0x50] sm:$0xff]
      %v161 = vld [vmem:[%s143 + $0x60] sm:$0xff]
      %v162 = vld [vmem:[%s143 + $0x68] sm:$0xff]
      %v163 = vld [vmem:[%s143 + $0x78] sm:$0xff]
      %v164 = vld [vmem:[%s143 + $0x80] sm:$0xff]
      %v165 = vld [vmem:[%s143 + $0x90] sm:$0xff]
      %v166 = vld [vmem:[%s143 + $0x98] sm:$0xff]
      %v167 = vld [vmem:[%s143 + $0xa8] sm:$0xff]
      %v168 = vld [vmem:[%s143 + $0xb0] sm:$0xff]
      %v169 = vld [vmem:[%s143 + $0xc0] sm:$0xff]
      %v170 = vld [vmem:[%s143 + $0xc8] sm:$0xff]
      %v171 = vld [vmem:[%s143 + $0xd8] sm:$0xff]
      %v172 = vld [vmem:[%s143 + $0xe0] sm:$0xff]
      %v173 = vld [vmem:[%s143 + $0x1] sm:$0xff]
      %v174 = vld [vmem:[%s143 + $0x9] sm:$0xff]
      %v175 = vld [vmem:[%s143 + $0x19] sm:$0xff]
      %v176 = vld [vmem:[%s143 + $0x21] sm:$0xff]
      %v177 = vld [vmem:[%s143 + $0x31] sm:$0xff]
      %v178 = vld [vmem:[%s143 + $0x39] sm:$0xff]
      %v179 = vld [vmem:[%s143 + $0x49] sm:$0xff]
      %v180 = vld [vmem:[%s143 + $0x51] sm:$0xff]
      %v181 = vld [vmem:[%s143 + $0x61] sm:$0xff]
      %v182 = vld [vmem:[%s143 + $0x69] sm:$0xff]
      %v183 = vld [vmem:[%s143 + $0x79] sm:$0xff]
      %v184 = vld [vmem:[%s143 + $0x81] sm:$0xff]
      %v185 = vld [vmem:[%s143 + $0x91] sm:$0xff]
      %v186 = vld [vmem:[%s143 + $0x99] sm:$0xff]
      %v187 = vld [vmem:[%s143 + $0xa9] sm:$0xff]
      %v188 = vld [vmem:[%s143 + $0xb1] sm:$0xff]
      %v189 = vld [vmem:[%s143 + $0xc1] sm:$0xff]
      %v190 = vld [vmem:[%s143 + $0xc9] sm:$0xff]
      %v191 = vld [vmem:[%s143 + $0xd9] sm:$0xff]
      %v192 = vld [vmem:[%s143 + $0xe1] sm:$0xff]
      %v193 = vld [vmem:[%s143 + $0x2] sm:$0xff]
      %v194 = vld [vmem:[%s143 + $0xa] sm:$0xff]
      %v195 = vld [vmem:[%s143 + $0x1a] sm:$0xff]
      %v196 = vld [vmem:[%s143 + $0x22] sm:$0xff]
      %v197 = vld [vmem:[%s143 + $0x32] sm:$0xff]
      %v198 = vld [vmem:[%s143 + $0x3a] sm:$0xff]
      %v199 = vld [vmem:[%s143 + $0x4a] sm:$0xff]
      %v200 = vld [vmem:[%s143 + $0x52] sm:$0xff]
      %v201 = vld [vmem:[%s143 + $0x62] sm:$0xff]
      %v202 = vld [vmem:[%s143 + $0x6a] sm:$0xff]
      %v203 = vld [vmem:[%s143 + $0x7a] sm:$0xff]
      %v204 = vld [vmem:[%s143 + $0x82] sm:$0xff]
      %v205 = vld [vmem:[%s143 + $0x92] sm:$0xff]
      %v206 = vld [vmem:[%s143 + $0x9a] sm:$0xff]
      %v207 = vld [vmem:[%s143 + $0xaa] sm:$0xff]
      %v208 = vld [vmem:[%s143 + $0xb2] sm:$0xff]
      %v209 = vld [vmem:[%s143 + $0xc2] sm:$0xff]
      %v210 = vld [vmem:[%s143 + $0xca] sm:$0xff]
      %v211 = vld [vmem:[%s143 + $0xda] sm:$0xff]
      %v212 = vld [vmem:[%s143 + $0xe2] sm:$0xff]
      %v213 = vmin.f32 %v153, %v173
      %v214 = vmin.f32 %v154, %v174
      %v215 = vmin.f32 %v155, %v175
      %v216 = vmin.f32 %v156, %v176
      %v217 = vmin.f32 %v157, %v177
      %v218 = vmin.f32 %v158, %v178
      %v219 = vmin.f32 %v159, %v179
      %v220 = vmin.f32 %v160, %v180
      %v221 = vmin.f32 %v161, %v181
      %v222 = vmin.f32 %v162, %v182
      %v223 = vmin.f32 %v163, %v183
      %v224 = vmin.f32 %v164, %v184
      %v225 = vmin.f32 %v165, %v185
      %v226 = vmin.f32 %v166, %v186
      %v227 = vmin.f32 %v167, %v187
      %v228 = vmin.f32 %v168, %v188
      %v229 = vmin.f32 %v169, %v189
      %v230 = vmin.f32 %v170, %v190
      %v231 = vmin.f32 %v171, %v191
      %v232 = vmin.f32 %v172, %v192
      %v233 = vmax.f32 %v153, %v173
      %v234 = vmax.f32 %v154, %v174
      %v235 = vmax.f32 %v155, %v175
      %v236 = vmax.f32 %v156, %v176
      %v237 = vmax.f32 %v157, %v177
      %v238 = vmax.f32 %v158, %v178
      %v239 = vmax.f32 %v159, %v179
      %v240 = vmax.f32 %v160, %v180
      %v241 = vmax.f32 %v161, %v181
      %v242 = vmax.f32 %v162, %v182
      %v243 = vmax.f32 %v163, %v183
      %v244 = vmax.f32 %v164, %v184
      %v245 = vmax.f32 %v165, %v185
      %v246 = vmax.f32 %v166, %v186
      %v247 = vmax.f32 %v167, %v187
      %v248 = vmax.f32 %v168, %v188
      %v249 = vmax.f32 %v169, %v189
      %v250 = vmax.f32 %v170, %v190
      %v251 = vmax.f32 %v171, %v191
      %v252 = vmax.f32 %v172, %v192
      %v253 = vmin.f32 %v233, %v193
      %v254 = vmin.f32 %v234, %v194
      %v255 = vmin.f32 %v235, %v195
      %v256 = vmin.f32 %v236, %v196
      %v257 = vmin.f32 %v237, %v197
      %v258 = vmin.f32 %v238, %v198
      %v259 = vmin.f32 %v239, %v199
      %v260 = vmin.f32 %v240, %v200
      %v261 = vmin.f32 %v241, %v201
      %v262 = vmin.f32 %v242, %v202
      %v263 = vmin.f32 %v243, %v203
      %v264 = vmin.f32 %v244, %v204
      %v265 = vmin.f32 %v245, %v205
      %v266 = vmin.f32 %v246, %v206
      %v267 = vmin.f32 %v247, %v207
      %v268 = vmin.f32 %v248, %v208
      %v269 = vmin.f32 %v249, %v209
      %v270 = vmin.f32 %v250, %v210
      %v271 = vmin.f32 %v251, %v211
      %v272 = vmin.f32 %v252, %v212
      %v273 = vmax.f32 %v233, %v193
      %v274 = vmax.f32 %v234, %v194
      %v275 = vmax.f32 %v235, %v195
      %v276 = vmax.f32 %v236, %v196
      %v277 = vmax.f32 %v237, %v197
      %v278 = vmax.f32 %v238, %v198
      %v279 = vmax.f32 %v239, %v199
      %v280 = vmax.f32 %v240, %v200
      %v281 = vmax.f32 %v241, %v201
      %v282 = vmax.f32 %v242, %v202
      %v283 = vmax.f32 %v243, %v203
      %v284 = vmax.f32 %v244, %v204
      %v285 = vmax.f32 %v245, %v205
      %v286 = vmax.f32 %v246, %v206
      %v287 = vmax.f32 %v247, %v207
      %v288 = vmax.f32 %v248, %v208
      %v289 = vmax.f32 %v249, %v209
      %v290 = vmax.f32 %v250, %v210
      %v291 = vmax.f32 %v251, %v211
      %v292 = vmax.f32 %v252, %v212
      %v293 = vmin.f32 %v213, %v253
      %v294 = vmin.f32 %v214, %v254
      %v295 = vmin.f32 %v215, %v255
      %v296 = vmin.f32 %v216, %v256
      %v297 = vmin.f32 %v217, %v257
      %v298 = vmin.f32 %v218, %v258
      %v299 = vmin.f32 %v219, %v259
      %v300 = vmin.f32 %v220, %v260
      %v301 = vmin.f32 %v221, %v261
      %v302 = vmin.f32 %v222, %v262
      %v303 = vmin.f32 %v223, %v263
      %v304 = vmin.f32 %v224, %v264
      %v305 = vmin.f32 %v225, %v265
      %v306 = vmin.f32 %v226, %v266
      %v307 = vmin.f32 %v227, %v267
      %v308 = vmin.f32 %v228, %v268
      %v309 = vmin.f32 %v229, %v269
      %v310 = vmin.f32 %v230, %v270
      %v311 = vmin.f32 %v231, %v271
      %v312 = vmin.f32 %v232, %v272
      %v313 = vmax.f32 %v213, %v253
      %v314 = vmax.f32 %v214, %v254
      %v315 = vmax.f32 %v215, %v255
      %v316 = vmax.f32 %v216, %v256
      %v317 = vmax.f32 %v217, %v257
      %v318 = vmax.f32 %v218, %v258
      %v319 = vmax.f32 %v219, %v259
      %v320 = vmax.f32 %v220, %v260
      %v321 = vmax.f32 %v221, %v261
      %v322 = vmax.f32 %v222, %v262
      %v323 = vmax.f32 %v223, %v263
      %v324 = vmax.f32 %v224, %v264
      %v325 = vmax.f32 %v225, %v265
      %v326 = vmax.f32 %v226, %v266
      %v327 = vmax.f32 %v227, %v267
      %v328 = vmax.f32 %v228, %v268
      %v329 = vmax.f32 %v229, %v269
      %v330 = vmax.f32 %v230, %v270
      %v331 = vmax.f32 %v231, %v271
      %v332 = vmax.f32 %v232, %v272
      %v333 = vmax.f32 %v293, %v295
      %v334 = vmax.f32 %v294, %v296
      %v335 = vmax.f32 %v295, %v297
      %v336 = vmax.f32 %v296, %v298
      %v337 = vmax.f32 %v297, %v299
      %v338 = vmax.f32 %v298, %v300
      %v339 = vmax.f32 %v299, %v301
      %v340 = vmax.f32 %v300, %v302
      %v341 = vmax.f32 %v301, %v303
      %v342 = vmax.f32 %v302, %v304
      %v343 = vmax.f32 %v303, %v305
      %v344 = vmax.f32 %v304, %v306
      %v345 = vmax.f32 %v305, %v307
      %v346 = vmax.f32 %v306, %v308
      %v347 = vmax.f32 %v307, %v309
      %v348 = vmax.f32 %v308, %v310
      %v349 = vmax.f32 %v333, %v297
      %v350 = vmax.f32 %v334, %v298
      %v351 = vmax.f32 %v335, %v299
      %v352 = vmax.f32 %v336, %v300
      %v353 = vmax.f32 %v337, %v301
      %v354 = vmax.f32 %v338, %v302
      %v355 = vmax.f32 %v339, %v303
      %v356 = vmax.f32 %v340, %v304
      %v357 = vmax.f32 %v341, %v305
      %v358 = vmax.f32 %v342, %v306
      %v359 = vmax.f32 %v343, %v307
      %v360 = vmax.f32 %v344, %v308
      %v361 = vmax.f32 %v345, %v309
      %v362 = vmax.f32 %v346, %v310
      %v363 = vmax.f32 %v347, %v311
      %v364 = vmax.f32 %v348, %v312
      %v365 = vmin.f32 %v273, %v275
      %v366 = vmin.f32 %v274, %v276
      %v367 = vmin.f32 %v275, %v277
      %v368 = vmin.f32 %v276, %v278
      %v369 = vmin.f32 %v277, %v279
      %v370 = vmin.f32 %v278, %v280
      %v371 = vmin.f32 %v279, %v281
      %v372 = vmin.f32 %v280, %v282
      %v373 = vmin.f32 %v281, %v283
      %v374 = vmin.f32 %v282, %v284
      %v375 = vmin.f32 %v283, %v285
      %v376 = vmin.f32 %v284, %v286
      %v377 = vmin.f32 %v285, %v287
      %v378 = vmin.f32 %v286, %v288
      %v379 = vmin.f32 %v287, %v289
      %v380 = vmin.f32 %v288, %v290
      %v381 = vmin.f32 %v365, %v277
      %v382 = vmin.f32 %v366, %v278
      %v383 = vmin.f32 %v367, %v279
      %v384 = vmin.f32 %v368, %v280
      %v385 = vmin.f32 %v369, %v281
      %v386 = vmin.f32 %v370, %v282
      %v387 = vmin.f32 %v371, %v283
      %v388 = vmin.f32 %v372, %v284
      %v389 = vmin.f32 %v373, %v285
      %v390 = vmin.f32 %v374, %v286
      %v391 = vmin.f32 %v375, %v287
      %v392 = vmin.f32 %v376, %v288
      %v393 = vmin.f32 %v377, %v289
      %v394 = vmin.f32 %v378, %v290
      %v395 = vmin.f32 %v379, %v291
      %v396 = vmin.f32 %v380, %v292
      %v397 = vmin.f32 %v313, %v315
      %v398 = vmin.f32 %v314, %v316
      %v399 = vmin.f32 %v315, %v317
      %v400 = vmin.f32 %v316, %v318
      %v401 = vmin.f32 %v317, %v319
      %v402 = vmin.f32 %v318, %v320
      %v403 = vmin.f32 %v319, %v321
      %v404 = vmin.f32 %v320, %v322
      %v405 = vmin.f32 %v321, %v323
      %v406 = vmin.f32 %v322, %v324
      %v407 = vmin.f32 %v323, %v325
      %v408 = vmin.f32 %v324, %v326
      %v409 = vmin.f32 %v325, %v327
      %v410 = vmin.f32 %v326, %v328
      %v411 = vmin.f32 %v327, %v329
      %v412 = vmin.f32 %v328, %v330
      %v413 = vmax.f32 %v313, %v315
      %v414 = vmax.f32 %v314, %v316
      %v415 = vmax.f32 %v315, %v317
      %v416 = vmax.f32 %v316, %v318
      %v417 = vmax.f32 %v317, %v319
      %v418 = vmax.f32 %v318, %v320
      %v419 = vmax.f32 %v319, %v321
      %v420 = vmax.f32 %v320, %v322
      %v421 = vmax.f32 %v321, %v323
      %v422 = vmax.f32 %v322, %v324
      %v423 = vmax.f32 %v323, %v325
      %v424 = vmax.f32 %v324, %v326
      %v425 = vmax.f32 %v325, %v327
      %v426 = vmax.f32 %v326, %v328
      %v427 = vmax.f32 %v327, %v329
      %v428 = vmax.f32 %v328, %v330
      %v429 = vmin.f32 %v413, %v317
      %v430 = vmin.f32 %v414, %v318
      %v431 = vmin.f32 %v415, %v319
      %v432 = vmin.f32 %v416, %v320
      %v433 = vmin.f32 %v417, %v321
      %v434 = vmin.f32 %v418, %v322
      %v435 = vmin.f32 %v419, %v323
      %v436 = vmin.f32 %v420, %v324
      %v437 = vmin.f32 %v421, %v325
      %v438 = vmin.f32 %v422, %v326
      %v439 = vmin.f32 %v423, %v327
      %v440 = vmin.f32 %v424, %v328
      %v441 = vmin.f32 %v425, %v329
      %v442 = vmin.f32 %v426, %v330
      %v443 = vmin.f32 %v427, %v331
      %v444 = vmin.f32 %v428, %v332
      %v445 = vmax.f32 %v397, %v429
      %v446 = vmax.f32 %v398, %v430
      %v447 = vmax.f32 %v399, %v431
      %v448 = vmax.f32 %v400, %v432
      %v449 = vmax.f32 %v401, %v433
      %v450 = vmax.f32 %v402, %v434
      %v451 = vmax.f32 %v403, %v435
      %v452 = vmax.f32 %v404, %v436
      %v453 = vmax.f32 %v405, %v437
      %v454 = vmax.f32 %v406, %v438
      %v455 = vmax.f32 %v407, %v439
      %v456 = vmax.f32 %v408, %v440
      %v457 = vmax.f32 %v409, %v441
      %v458 = vmax.f32 %v410, %v442
      %v459 = vmax.f32 %v411, %v443
      %v460 = vmax.f32 %v412, %v444
      %v461 = vmin.f32 %v349, %v445
      %v462 = vmin.f32 %v350, %v446
      %v463 = vmin.f32 %v351, %v447
      %v464 = vmin.f32 %v352, %v448
      %v465 = vmin.f32 %v353, %v449
      %v466 = vmin.f32 %v354, %v450
      %v467 = vmin.f32 %v355, %v451
      %v468 = vmin.f32 %v356, %v452
      %v469 = vmin.f32 %v357, %v453
      %v470 = vmin.f32 %v358, %v454
      %v471 = vmin.f32 %v359, %v455
      %v472 = vmin.f32 %v360, %v456
      %v473 = vmin.f32 %v361, %v457
      %v474 = vmin.f32 %v362, %v458
      %v475 = vmin.f32 %v363, %v459
      %v476 = vmin.f32 %v364, %v460
      %v477 = vmax.f32 %v349, %v445
      %v478 = vmax.f32 %v350, %v446
      %v479 = vmax.f32 %v351, %v447
      %v480 = vmax.f32 %v352, %v448
      %v481 = vmax.f32 %v353, %v449
      %v482 = vmax.f32 %v354, %v450
      %v483 = vmax.f32 %v355, %v451
      %v484 = vmax.f32 %v356, %v452
      %v485 = vmax.f32 %v357, %v453
      %v486 = vmax.f32 %v358, %v454
      %v487 = vmax.f32 %v359, %v455
      %v488 = vmax.f32 %v360, %v456
      %v489 = vmax.f32 %v361, %v457
      %v490 = vmax.f32 %v362, %v458
      %v491 = vmax.f32 %v363, %v459
      %v492 = vmax.f32 %v364, %v460
      %v493 = vmin.f32 %v477, %v381
      %v494 = vmin.f32 %v478, %v382
      %v495 = vmin.f32 %v479, %v383
      %v496 = vmin.f32 %v480, %v384
      %v497 = vmin.f32 %v481, %v385
      %v498 = vmin.f32 %v482, %v386
      %v499 = vmin.f32 %v483, %v387
      %v500 = vmin.f32 %v484, %v388
      %v501 = vmin.f32 %v485, %v389
      %v502 = vmin.f32 %v486, %v390
      %v503 = vmin.f32 %v487, %v391
      %v504 = vmin.f32 %v488, %v392
      %v505 = vmin.f32 %v489, %v393
      %v506 = vmin.f32 %v490, %v394
      %v507 = vmin.f32 %v491, %v395
      %v508 = vmin.f32 %v492, %v396
      %v509 = vmax.f32 %v461, %v493
      %v510 = vmax.f32 %v462, %v494
      %v511 = vmax.f32 %v463, %v495
      %v512 = vmax.f32 %v464, %v496
      %v513 = vmax.f32 %v465, %v497
      %v514 = vmax.f32 %v466, %v498
      %v515 = vmax.f32 %v467, %v499
      %v516 = vmax.f32 %v468, %v500
      %v517 = vmax.f32 %v469, %v501
      %v518 = vmax.f32 %v470, %v502
      %v519 = vmax.f32 %v471, %v503
      %v520 = vmax.f32 %v472, %v504
      %v521 = vmax.f32 %v473, %v505
      %v522 = vmax.f32 %v474, %v506
      %v523 = vmax.f32 %v475, %v507
      %v524 = vmax.f32 %v476, %v508
      %vm525 = vcmask 64512
      %526 = vst.msk [vmem:[%s152] sm:$0xff] %vm525, %v509
      %527 = vst.msk [vmem:[%s152 + $0x8] sm:$0xff] %vm525, %v510
      %528 = vst.msk [vmem:[%s152 + $0x10] sm:$0xff] %vm525, %v511
      %529 = vst.msk [vmem:[%s152 + $0x18] sm:$0xff] %vm525, %v512
      %530 = vst.msk [vmem:[%s152 + $0x20] sm:$0xff] %vm525, %v513
      %531 = vst.msk [vmem:[%s152 + $0x28] sm:$0xff] %vm525, %v514
      %532 = vst.msk [vmem:[%s152 + $0x30] sm:$0xff] %vm525, %v515
      %533 = vst.msk [vmem:[%s152 + $0x38] sm:$0xff] %vm525, %v516
      %534 = vst.msk [vmem:[%s152 + $0x40] sm:$0xff] %vm525, %v517
      %535 = vst.msk [vmem:[%s152 + $0x48] sm:$0xff] %vm525, %v518
      %536 = vst.msk [vmem:[%s152 + $0x50] sm:$0xff] %vm525, %v519
      %537 = vst.msk [vmem:[%s152 + $0x58] sm:$0xff] %vm525, %v520
      %538 = vst.msk [vmem:[%s152 + $0x60] sm:$0xff] %vm525, %v521
      %539 = vst.msk [vmem:[%s152 + $0x68] sm:$0xff] %vm525, %v522
      %540 = vst.msk [vmem:[%s152 + $0x70] sm:$0xff] %vm525, %v523
      %541 = vst.msk [vmem:[%s152 + $0x78] sm:$0xff] %vm525, %v524
      %p542 = scmp.lt.s32.totalorder %s16, 0
      %s543 = scalar_select %p542, %s16, 0
      %p544 = scmp.lt.s32.totalorder %s17, 1
      %s545 = scalar_select %p544, %s17, 1
      %s546 = smul.addr %s545, 16
      %s547 = smul.addr %s543, 32
      %s548 = sadd.s32 %s546, %s547
      %s549 = smul.addr %s548, 8
      %s550 = scalar_lea.vmem %s1, %s549
      // Predicated region
      $region25: #{_median_pool_2d_impl.1} parent=23 // pred_check
        %p551 = pneg %p72
      $region26: #{_median_pool_2d_impl.1} parent=23 // pred_check_branch
        %553 = sbr.rel (%p551) target = $region28
      $region27: #{_median_pool_2d_impl.1} parent=23 // pred_region
        _
      $region28: #{_median_pool_2d_impl.1} parent=23 // pred_fallthru
        _
    $region24: #{_median_pool_2d_impl.1} parent=5 // pred_fallthru
      _
    %p554 = scmp.le.s32.totalorder 2, %s7
    // Predicated region
    $region29: #{_median_pool_2d_impl.1} parent=5 // pred_check
      %p555 = pneg %p554
    $region30: #{_median_pool_2d_impl.1} parent=5 // pred_check_branch
      %557 = sbr.rel (%p555) target = $region32
    $region31: #{_median_pool_2d_impl.1} parent=5 // pred_region
      %s558 = ssub.s32 %s7, 2
      // Predicated region
      $region33: #{_median_pool_2d_impl.1} parent=31 // pred_check
        %p559 = pneg %p78
      $region34: #{_median_pool_2d_impl.1} parent=31 // pred_check_branch
        %561 = sbr.rel (%p559) target = $region36
      $region35: #{_median_pool_2d_impl.1} parent=31 // pred_region
        %p562 = scmp.lt.s32.totalorder %s18, 0
        %s563 = scalar_select %p562, %s18, 0
        %p564 = scmp.lt.s32.totalorder %s19, 1
        %s565 = scalar_select %p564, %s19, 1
        %s566 = smul.addr %s565, 16
        %s567 = smul.addr %s563, 32
        %s568 = sadd.s32 %s566, %s567
        %s569 = smul.addr %s568, 8
        %s570 = scalar_lea.vmem %s1, %s569
      $region36: #{_median_pool_2d_impl.1} parent=31 // pred_fallthru
        _
    $region32: #{_median_pool_2d_impl.1} parent=5 // pred_fallthru
      _
  $region6: #{_median_pool_2d_impl.1} parent=0 // loop_footer
    %s11 = sadd.s32 1, %s7
  $region7: #{_median_pool_2d_impl.1} parent=0 // loop_footer_branch
    %6 = sbr.rel target = $region3
  $region8: #{_median_pool_2d_impl.1} parent=0 // loop_exit
    _

</llo_original>
